<compile_context>
chip_gen: v6e
topology: v6e:2x2x1
jax: 0.10.0
libtpu: 0.0.40
codegen_flags: <defaults>
</compile_context>

<pallas_src>
import functools

import jax
import jax.numpy as jnp
from jax.experimental import pallas as pl
from jax.experimental.pallas import tpu as pltpu


def _round_up(x, m):
    return (x + m - 1) // m * m


def dqn_kernel(x_ref, w1_ref, b1_ref, w2_ref, b2_ref, o_ref):
    # x_ref:  (TB, D)   f32  flattened state batch tile
    # w1_ref: (D, Hp)   bf16 fc1 weight, pre-transposed + padded (resident)
    # b1_ref: (1, Hp)   f32  fc1 bias, padded
    # w2_ref: (Hp, Ap)  bf16 fc2 weight, pre-transposed + padded (resident)
    # b2_ref: (1, Ap)   f32  fc2 bias, padded
    # o_ref:  (TB, Ap)  f32  lane-dense Q slab (sliced back to A in wrapper)
    x = x_ref[...].astype(jnp.bfloat16)
    h = jnp.dot(x, w1_ref[...], preferred_element_type=jnp.float32) + b1_ref[...]
    h = jnp.maximum(h, 0.0)                                   # ReLU in f32
    out = jnp.dot(h.astype(jnp.bfloat16), w2_ref[...],
                  preferred_element_type=jnp.float32) + b2_ref[...]
    o_ref[...] = out.astype(o_ref.dtype)


def prepare_dqn_params(w1, b1, w2, b2, *, weight_dtype=jnp.bfloat16):
    """One-time prep of PyTorch-layout params (out_features, in_features).

    Returns (w1_p, b1_p, w2_p, b2_p) in kernel layout:
      w1_p: (D, Hp) bf16, b1_p: (1, Hp) f32, w2_p: (Hp, Ap) bf16, b2_p: (1, Ap) f32
    with Hp = round_up(H, 128), Ap = round_up(max(A, 128), 128); padding is zero,
    so padded hidden units / actions contribute nothing.
    """
    H, D = w1.shape
    A = w2.shape[0]
    Hp = _round_up(H, 128)
    Ap = _round_up(max(A, 128), 128)

    w1_p = jnp.zeros((D, Hp), weight_dtype).at[:, :H].set(
        jnp.transpose(w1).astype(weight_dtype))
    b1_p = jnp.zeros((1, Hp), jnp.float32).at[:, :H].set(
        b1.astype(jnp.float32)[None, :])
    w2_p = jnp.zeros((Hp, Ap), weight_dtype).at[:H, :A].set(
        jnp.transpose(w2).astype(weight_dtype))
    b2_p = jnp.zeros((1, Ap), jnp.float32).at[:, :A].set(
        b2.astype(jnp.float32)[None, :])
    return w1_p, b1_p, w2_p, b2_p


@functools.partial(jax.jit, static_argnames=("action_size",))
def dqn_forward(x_nchw, w1_p, b1_p, w2_p, b2_p, *, action_size):
    """Forward pass: flatten like x.view(B, -1), run fused fc1+ReLU+fc2 kernel."""
    B = x_nchw.shape[0]
    x2d = x_nchw.reshape(B, -1).astype(jnp.float32)          # == x.view(B, -1)
    D = x2d.shape[1]
    Hp = w1_p.shape[1]
    Ap = w2_p.shape[1]

    # Sublane-friendly batch tile: multiples of 8, 128-row tiles for big batches.
    TB = 128 if B >= 128 else _round_up(B, 8)
    Bp = _round_up(B, TB)
    if Bp != B:
        x2d = jnp.zeros((Bp, D), x2d.dtype).at[:B].set(x2d)
    nb = Bp // TB

    out = pl.pallas_call(
        dqn_kernel,
        out_shape=jax.ShapeDtypeStruct((Bp, Ap), jnp.float32),
        grid=(nb,),
        in_specs=[
            pl.BlockSpec((TB, D), lambda i: (i, 0)),     # batch-tiled activations
            pl.BlockSpec((D, Hp), lambda i: (0, 0)),     # weights stay resident
            pl.BlockSpec((1, Hp), lambda i: (0, 0)),
            pl.BlockSpec((Hp, Ap), lambda i: (0, 0)),
            pl.BlockSpec((1, Ap), lambda i: (0, 0)),
        ],
        out_specs=pl.BlockSpec((TB, Ap), lambda i: (i, 0)),  # lane-dense output
        compiler_params=pltpu.CompilerParams(
            dimension_semantics=("parallel",),
        ),
    )(x2d, w1_p, b1_p, w2_p, b2_p)

    return out[:B, :action_size]


if __name__ == "__main__":
    # Shapes consistent with DQNNet: state_shape=(4,4,4) -> input_dim=64,
    # hidden_dim=1000, action_size=6, batch=2.
    state_shape = (4, 4, 4)
    action_size = 6
    hidden_dim = 1000
    input_dim = 4 * 4 * 4
    batch = 2

    key = jax.random.PRNGKey(0)
    kx, k1, k2, k3, k4 = jax.random.split(key, 5)

    x = jax.random.normal(kx, (batch,) + state_shape, dtype=jnp.float32)
    # PyTorch-shaped params: fc1.weight (H, D), fc1.bias (H,), fc2.weight (A, H), fc2.bias (A,)
    w1 = jax.random.normal(k1, (hidden_dim, input_dim), dtype=jnp.float32) * 0.05
    b1 = jax.random.normal(k2, (hidden_dim,), dtype=jnp.float32) * 0.05
    w2 = jax.random.normal(k3, (action_size, hidden_dim), dtype=jnp.float32) * 0.05
    b2 = jax.random.normal(k4, (action_size,), dtype=jnp.float32) * 0.05

    # One-time param prep (transpose + pad + bf16) -- amortized across calls.
    w1_p, b1_p, w2_p, b2_p = prepare_dqn_params(w1, b1, w2, b2)

    out = dqn_forward(x, w1_p, b1_p, w2_p, b2_p, action_size=action_size)
    out = jax.block_until_ready(out)
    assert out.shape == (batch, action_size)

    # Rounding-matched reference: identical bf16 operand rounding, f32 accumulation.
    x2d = x.reshape(batch, -1)
    bf = lambda a: a.astype(jnp.bfloat16).astype(jnp.float32)
    h_ref = jnp.maximum(bf(x2d) @ bf(w1).T + b1, 0.0)
    ref_matched = bf(h_ref) @ bf(w2).T + b2
    assert jnp.allclose(out, ref_matched, atol=2e-3, rtol=2e-3), (
        "mismatch vs rounding-matched reference")

    # Loose sanity check vs the pure-f32 PyTorch-style forward (bf16 weight quantization).
    h32 = jnp.maximum(x2d @ w1.T + b1, 0.0)
    ref_f32 = h32 @ w2.T + b2
    assert jnp.allclose(out, ref_f32, atol=5e-2, rtol=5e-2), (
        "mismatch vs f32 reference beyond bf16 tolerance")

    print("KERNEL_OK")
</pallas_src>

<mosaic_0001>
module attributes {stable_mosaic.version = 11 : i64} {
  func.func @dqn_kernel(%arg0: i32, %arg1: memref<8x64xf32, #tpu.memory_space<vmem>>, %arg2: memref<64x1024xbf16, #tpu.memory_space<vmem>>, %arg3: memref<1x1024xf32, #tpu.memory_space<vmem>>, %arg4: memref<1024x128xbf16, #tpu.memory_space<vmem>>, %arg5: memref<1x128xf32, #tpu.memory_space<vmem>>, %arg6: memref<8x128xf32, #tpu.memory_space<vmem>>) attributes {dimension_semantics = [#tpu.dimension_semantics<parallel>], iteration_bounds = array<i64: 1>, scalar_prefetch = 0 : i64, scratch_operands = 0 : i64, tpu.core_type = #tpu.core_type<tc>, window_params = [{transform_indices = @transform_0, window_bounds = array<i64: 8, 64>}, {pipeline_mode = #tpu.pipeline_mode<synchronous>, transform_indices = @transform_1, window_bounds = array<i64: 64, 1024>}, {pipeline_mode = #tpu.pipeline_mode<synchronous>, transform_indices = @transform_2, window_bounds = array<i64: 1, 1024>}, {pipeline_mode = #tpu.pipeline_mode<synchronous>, transform_indices = @transform_3, window_bounds = array<i64: 1024, 128>}, {pipeline_mode = #tpu.pipeline_mode<synchronous>, transform_indices = @transform_4, window_bounds = array<i64: 1, 128>}, {transform_indices = @transform_5, window_bounds = array<i64: 8, 128>}]} {
    %c0 = arith.constant 0 : index
    %c0_0 = arith.constant 0 : index
    %0 = vector.load %arg1[%c0, %c0_0] : memref<8x64xf32, #tpu.memory_space<vmem>>, vector<8x64xf32>
    %1 = arith.truncf %0 : vector<8x64xf32> to vector<8x64xbf16>
    %c0_1 = arith.constant 0 : index
    %c0_2 = arith.constant 0 : index
    %2 = vector.load %arg2[%c0_1, %c0_2] : memref<64x1024xbf16, #tpu.memory_space<vmem>>, vector<64x1024xbf16>
    %cst = arith.constant dense<0.000000e+00> : vector<8x1024xf32>
    %3 = tpu.matmul %1, %2, %cst {dimension_numbers = #tpu.dot_dimension_numbers<[1], [0], [0], [1], [0, 0, 1, 1], [], []>} : vector<8x64xbf16>, vector<64x1024xbf16>, vector<8x1024xf32> -> vector<8x1024xf32>
    %c0_3 = arith.constant 0 : index
    %c0_4 = arith.constant 0 : index
    %4 = vector.load %arg3[%c0_3, %c0_4] : memref<1x1024xf32, #tpu.memory_space<vmem>>, vector<1x1024xf32>
    %5 = vector.broadcast %4 : vector<1x1024xf32> to vector<8x1024xf32>
    %6 = arith.addf %3, %5 : vector<8x1024xf32>
    %cst_5 = arith.constant 0.000000e+00 : f32
    %7 = vector.broadcast %cst_5 : f32 to vector<8x1024xf32>
    %8 = arith.maximumf %6, %7 : vector<8x1024xf32>
    %9 = arith.truncf %8 : vector<8x1024xf32> to vector<8x1024xbf16>
    %c0_6 = arith.constant 0 : index
    %c0_7 = arith.constant 0 : index
    %10 = vector.load %arg4[%c0_6, %c0_7] : memref<1024x128xbf16, #tpu.memory_space<vmem>>, vector<1024x128xbf16>
    %cst_8 = arith.constant dense<0.000000e+00> : vector<8x128xf32>
    %11 = tpu.matmul %9, %10, %cst_8 {dimension_numbers = #tpu.dot_dimension_numbers<[1], [0], [0], [1], [0, 0, 1, 1], [], []>} : vector<8x1024xbf16>, vector<1024x128xbf16>, vector<8x128xf32> -> vector<8x128xf32>
    %c0_9 = arith.constant 0 : index
    %c0_10 = arith.constant 0 : index
    %12 = vector.load %arg5[%c0_9, %c0_10] : memref<1x128xf32, #tpu.memory_space<vmem>>, vector<1x128xf32>
    %13 = vector.broadcast %12 : vector<1x128xf32> to vector<8x128xf32>
    %14 = arith.addf %11, %13 : vector<8x128xf32>
    %c0_11 = arith.constant 0 : index
    %c0_12 = arith.constant 0 : index
    %15 = vector.load %arg6[%c0_11, %c0_12] : memref<8x128xf32, #tpu.memory_space<vmem>>, vector<8x128xf32>
    tpu.vector_store %arg6[%c0_11, %c0_12], %14 {strides = array<i32>} : memref<8x128xf32, #tpu.memory_space<vmem>>, vector<8x128xf32>,
    return
  }
  func.func @transform_0(%arg0: i32) -> (i32, i32) {
    %c0_i32 = arith.constant 0 : i32
    %c0_i32_0 = arith.constant 0 : i32
    return %arg0, %c0_i32 : i32, i32
  }
  func.func @transform_1(%arg0: i32) -> (i32, i32) {
    %c0_i32 = arith.constant 0 : i32
    %c0_i32_0 = arith.constant 0 : i32
    %c0_i32_1 = arith.constant 0 : i32
    return %c0_i32, %c0_i32_0 : i32, i32
  }
  func.func @transform_2(%arg0: i32) -> (i32, i32) {
    %c0_i32 = arith.constant 0 : i32
    %c0_i32_0 = arith.constant 0 : i32
    %c0_i32_1 = arith.constant 0 : i32
    return %c0_i32, %c0_i32_0 : i32, i32
  }
  func.func @transform_3(%arg0: i32) -> (i32, i32) {
    %c0_i32 = arith.constant 0 : i32
    %c0_i32_0 = arith.constant 0 : i32
    %c0_i32_1 = arith.constant 0 : i32
    return %c0_i32, %c0_i32_0 : i32, i32
  }
  func.func @transform_4(%arg0: i32) -> (i32, i32) {
    %c0_i32 = arith.constant 0 : i32
    %c0_i32_0 = arith.constant 0 : i32
    %c0_i32_1 = arith.constant 0 : i32
    return %c0_i32, %c0_i32_0 : i32, i32
  }
  func.func @transform_5(%arg0: i32) -> (i32, i32) {
    %c0_i32 = arith.constant 0 : i32
    %c0_i32_0 = arith.constant 0 : i32
    return %arg0, %c0_i32 : i32, i32
  }
}

</mosaic_0001>

<llo_original>
// kernel: dqn_forward.1
$region0: #{dqn_forward.1}
  #allocation0 [shape = 'u32[]', space=smem, size = 0x4, offset = 0x4, fixed_abs, tag = 'smem constant byte address 0x4 - core index']
  #allocation1 [shape = 'u32[144,128]{1,0:T(1,128)}', space=vmem, size = 0x12000, scoped, tag = 'internal scratch']
  %s0 = inlined_call_operand.vmem [shape: f32[8,64], index: 0, kind: input, shape index: {}]
  %s1 = inlined_call_operand.hbm [shape: bf16[64,1024], index: 1, kind: input, shape index: {}]
  %s2 = inlined_call_operand.vmem [shape: f32[1,1024], index: 2, kind: input, shape index: {}]
  %s3 = inlined_call_operand.hbm [shape: bf16[1024,128], index: 3, kind: input, shape index: {}]
  %s4 = inlined_call_operand.vmem [shape: f32[1,128], index: 4, kind: input, shape index: {}]
  %s5 = inlined_call_operand.vmem [shape: f32[8,128], index: 5, kind: output, shape index: {}]
  %s6 = sld [smem:[#allocation0]]
  $region38: #{dqn_forward.1} parent=0
    _
  %s8 = ssub.s32 1, %s6
  %s9 = scalar_select 0, %s8, %s6
  $region1: #{dqn_forward.1} parent=0
    #allocation2 [shape = 'u8[131072]{0}', space=vmem, size = 0x20000, scoped, tag = 'input window, operand 1, single buffered']
    #allocation3 [shape = 's32[1]{0}', space=sflag, size = 0x4, scoped, tag = 'scoped memory for dqn_forward.1']
    #allocation4 [shape = 'u8[262144]{0}', space=vmem, size = 0x40000, scoped, tag = 'input window, operand 3, single buffered']
    #allocation5 [shape = 's32[1]{0}', space=sflag, size = 0x4, scoped, tag = 'scoped memory for dqn_forward.1']
    %10 = vsyncpa [#allocation3], 0
    %11 = vsyncpa [#allocation5], 0
    // Predicated region
    $region2: #{dqn_forward.1} parent=1 // pred_check
      _
    $region3: #{dqn_forward.1} parent=1 // pred_check_branch
      %13 = sbr.rel (0) target = $region5
    $region4: #{dqn_forward.1} parent=1 // pred_region
      _
    $region5: #{dqn_forward.1} parent=1 // pred_fallthru
      _
    // Predicated region
    $region6: #{dqn_forward.1} parent=1 // pred_check
      _
    $region7: #{dqn_forward.1} parent=1 // pred_check_branch
      %15 = sbr.rel (0) target = $region9
    $region8: #{dqn_forward.1} parent=1 // pred_region
      %s17 = ssub.s32 4096, 4096
      %18 = vsyncadd [#allocation3], %s17
      %s19 = sshll.u32 [#allocation2], 4
      %s20 = int_to_ptr.vmem [resolvable:$true] %s19
      %25 = dma.hbm_to_vmem [thread:$0]  %s1, 4096, %s20, [#allocation3], 512, 512, 32
    $region9: #{dqn_forward.1} parent=1 // pred_fallthru
      _
    // Predicated region
    $region10: #{dqn_forward.1} parent=1 // pred_check
      _
    $region11: #{dqn_forward.1} parent=1 // pred_check_branch
      %27 = sbr.rel (0) target = $region13
    $region12: #{dqn_forward.1} parent=1 // pred_region
      _
    $region13: #{dqn_forward.1} parent=1 // pred_fallthru
      _
    // Predicated region
    $region14: #{dqn_forward.1} parent=1 // pred_check
      _
    $region15: #{dqn_forward.1} parent=1 // pred_check_branch
      %29 = sbr.rel (0) target = $region17
    $region16: #{dqn_forward.1} parent=1 // pred_region
      %s31 = ssub.s32 8192, 8192
      %32 = vsyncadd [#allocation5], %s31
      %s33 = sshll.u32 [#allocation4], 4
      %s34 = int_to_ptr.vmem [resolvable:$true] %s33
      %39 = dma.hbm_to_vmem [thread:$0]  %s3, 8192, %s34, [#allocation5], 64, 64, 4
    $region17: #{dqn_forward.1} parent=1 // pred_fallthru
      _
    // Predicated region
    $region18: #{dqn_forward.1} parent=1 // pred_check
      _
    $region19: #{dqn_forward.1} parent=1 // pred_check_branch
      %41 = sbr.rel (0) target = $region21
    $region20: #{dqn_forward.1} parent=1 // pred_region
      _
    $region21: #{dqn_forward.1} parent=1 // pred_fallthru
      _
    // Predicated region
    $region22: #{dqn_forward.1} parent=1 // pred_check
      _
    $region23: #{dqn_forward.1} parent=1 // pred_check_branch
      %43 = sbr.rel (0) target = $region25
    $region24: #{dqn_forward.1} parent=1 // pred_region
      %44 = dma.done [#allocation3], 4096
    $region25: #{dqn_forward.1} parent=1 // pred_fallthru
      _
    // Predicated region
    $region26: #{dqn_forward.1} parent=1 // pred_check
      _
    $region27: #{dqn_forward.1} parent=1 // pred_check_branch
      %46 = sbr.rel (0) target = $region29
    $region28: #{dqn_forward.1} parent=1 // pred_region
      %47 = dma.done [#allocation5], 8192
    $region29: #{dqn_forward.1} parent=1 // pred_fallthru
      _
    %v49 = vld [vmem:[%s0] sm:$0xff]
    %v50 = vpack.c.bf16 %v49, %v49
    %v51 = vld [vmem:[#allocation2] sm:$0xff]
    %v52 = vld [vmem:[#allocation2 + $0x8] sm:$0xff]
    %v53 = vld [vmem:[#allocation2 + $0x10] sm:$0xff]
    %v54 = vld [vmem:[#allocation2 + $0x18] sm:$0xff]
    %v55 = vld [vmem:[#allocation2 + $0x20] sm:$0xff]
    %v56 = vld [vmem:[#allocation2 + $0x28] sm:$0xff]
    %v57 = vld [vmem:[#allocation2 + $0x30] sm:$0xff]
    %v58 = vld [vmem:[#allocation2 + $0x38] sm:$0xff]
    %v59 = vld [vmem:[#allocation2 + $0x40] sm:$0xff]
    %v60 = vld [vmem:[#allocation2 + $0x48] sm:$0xff]
    %v61 = vld [vmem:[#allocation2 + $0x50] sm:$0xff]
    %v62 = vld [vmem:[#allocation2 + $0x58] sm:$0xff]
    %v63 = vld [vmem:[#allocation2 + $0x60] sm:$0xff]
    %v64 = vld [vmem:[#allocation2 + $0x68] sm:$0xff]
    %v65 = vld [vmem:[#allocation2 + $0x70] sm:$0xff]
    %v66 = vld [vmem:[#allocation2 + $0x78] sm:$0xff]
    %v67 = vld [vmem:[#allocation2 + $0x80] sm:$0xff]
    %v68 = vld [vmem:[#allocation2 + $0x88] sm:$0xff]
    %v69 = vld [vmem:[#allocation2 + $0x90] sm:$0xff]
    %v70 = vld [vmem:[#allocation2 + $0x98] sm:$0xff]
    %v71 = vld [vmem:[#allocation2 + $0xa0] sm:$0xff]
    %v72 = vld [vmem:[#allocation2 + $0xa8] sm:$0xff]
    %v73 = vld [vmem:[#allocation2 + $0xb0] sm:$0xff]
    %v74 = vld [vmem:[#allocation2 + $0xb8] sm:$0xff]
    %v75 = vld [vmem:[#allocation2 + $0xc0] sm:$0xff]
    %v76 = vld [vmem:[#allocation2 + $0xc8] sm:$0xff]
    %v77 = vld [vmem:[#allocation2 + $0xd0] sm:$0xff]
    %v78 = vld [vmem:[#allocation2 + $0xd8] sm:$0xff]
    %v79 = vld [vmem:[#allocation2 + $0xe0] sm:$0xff]
    %v80 = vld [vmem:[#allocation2 + $0xe8] sm:$0xff]
    %v81 = vld [vmem:[#allocation2 + $0xf0] sm:$0xff]
    %v82 = vld [vmem:[#allocation2 + $0xf8] sm:$0xff]
    %v83 = vld [vmem:[%s2] sm:$0xff]
    %v85 = vlaneseq
    %v86 = vshrl.u32 %v85, 7
    %v87 = vsub.s32 0, %v86
    %v88 = vrot.slane %v83, %v87
    %v89 = vlaneseq
    %v90 = vshrl.u32 %v89, 7
    %v91 = vsub.s32 1, %v90
    %v92 = vrot.slane %v83, %v91
    %v93 = vlaneseq
    %v94 = vshrl.u32 %v93, 7
    %v95 = vsub.s32 2, %v94
    %v96 = vrot.slane %v83, %v95
    %v97 = vlaneseq
    %v98 = vshrl.u32 %v97, 7
    %v99 = vsub.s32 3, %v98
    %v100 = vrot.slane %v83, %v99
    %v101 = vlaneseq
    %v102 = vshrl.u32 %v101, 7
    %v103 = vsub.s32 4, %v102
    %v104 = vrot.slane %v83, %v103
    %v105 = vlaneseq
    %v106 = vshrl.u32 %v105, 7
    %v107 = vsub.s32 5, %v106
    %v108 = vrot.slane %v83, %v107
    %v109 = vlaneseq
    %v110 = vshrl.u32 %v109, 7
    %v111 = vsub.s32 6, %v110
    %v112 = vrot.slane %v83, %v111
    %v113 = vlaneseq
    %v114 = vshrl.u32 %v113, 7
    %v115 = vsub.s32 7, %v114
    %v116 = vrot.slane %v83, %v115
    %v157 = vunpack.c.l.b16 %v51
    %v158 = vunpack.c.h.b16 %v51
    %v159 = vunpack.c.l.b16 %v52
    %v160 = vunpack.c.h.b16 %v52
    %v161 = vunpack.c.l.b16 %v53
    %v162 = vunpack.c.h.b16 %v53
    %v163 = vunpack.c.l.b16 %v54
    %v164 = vunpack.c.h.b16 %v54
    %v165 = vunpack.c.l.b16 %v55
    %v166 = vunpack.c.h.b16 %v55
    %v167 = vunpack.c.l.b16 %v56
    %v168 = vunpack.c.h.b16 %v56
    %v169 = vunpack.c.l.b16 %v57
    %v170 = vunpack.c.h.b16 %v57
    %v171 = vunpack.c.l.b16 %v58
    %v172 = vunpack.c.h.b16 %v58
    %v173 = vunpack.c.l.b16 %v59
    %v174 = vunpack.c.h.b16 %v59
    %v175 = vunpack.c.l.b16 %v60
    %v176 = vunpack.c.h.b16 %v60
    %v177 = vunpack.c.l.b16 %v61
    %v178 = vunpack.c.h.b16 %v61
    %v179 = vunpack.c.l.b16 %v62
    %v180 = vunpack.c.h.b16 %v62
    %v181 = vunpack.c.l.b16 %v63
    %v182 = vunpack.c.h.b16 %v63
    %v183 = vunpack.c.l.b16 %v64
    %v184 = vunpack.c.h.b16 %v64
    %v185 = vunpack.c.l.b16 %v65
    %v186 = vunpack.c.h.b16 %v65
    %v187 = vunpack.c.l.b16 %v66
    %v188 = vunpack.c.h.b16 %v66
    %v189 = vunpack.c.l.b16 %v67
    %v190 = vunpack.c.h.b16 %v67
    %v191 = vunpack.c.l.b16 %v68
    %v192 = vunpack.c.h.b16 %v68
    %v193 = vunpack.c.l.b16 %v69
    %v194 = vunpack.c.h.b16 %v69
    %v195 = vunpack.c.l.b16 %v70
    %v196 = vunpack.c.h.b16 %v70
    %v197 = vunpack.c.l.b16 %v71
    %v198 = vunpack.c.h.b16 %v71
    %v199 = vunpack.c.l.b16 %v72
    %v200 = vunpack.c.h.b16 %v72
    %v201 = vunpack.c.l.b16 %v73
    %v202 = vunpack.c.h.b16 %v73
    %v203 = vunpack.c.l.b16 %v74
    %v204 = vunpack.c.h.b16 %v74
    %v205 = vunpack.c.l.b16 %v75
    %v206 = vunpack.c.h.b16 %v75
    %v207 = vunpack.c.l.b16 %v76
    %v208 = vunpack.c.h.b16 %v76
    %v209 = vunpack.c.l.b16 %v77
    %v210 = vunpack.c.h.b16 %v77
    %v211 = vunpack.c.l.b16 %v78
    %v212 = vunpack.c.h.b16 %v78
    %v213 = vunpack.c.l.b16 %v79
    %v214 = vunpack.c.h.b16 %v79
    %v215 = vunpack.c.l.b16 %v80
    %v216 = vunpack.c.h.b16 %v80
    %v217 = vunpack.c.l.b16 %v81
    %v218 = vunpack.c.h.b16 %v81
    %v219 = vunpack.c.l.b16 %v82
    %v220 = vunpack.c.h.b16 %v82
    %v221 = vpack.c.b16 %v165, %v157
    %v222 = vpack.c.b16 %v166, %v158
    %v223 = vpack.c.b16 %v167, %v159
    %v224 = vpack.c.b16 %v168, %v160
    %v225 = vpack.c.b16 %v169, %v161
    %v226 = vpack.c.b16 %v170, %v162
    %v227 = vpack.c.b16 %v171, %v163
    %v228 = vpack.c.b16 %v172, %v164
    %v229 = vpack.c.b16 %v181, %v173
    %v230 = vpack.c.b16 %v182, %v174
    %v231 = vpack.c.b16 %v183, %v175
    %v232 = vpack.c.b16 %v184, %v176
    %v233 = vpack.c.b16 %v185, %v177
    %v234 = vpack.c.b16 %v186, %v178
    %v235 = vpack.c.b16 %v187, %v179
    %v236 = vpack.c.b16 %v188, %v180
    %v237 = vpack.c.b16 %v197, %v189
    %v238 = vpack.c.b16 %v198, %v190
    %v239 = vpack.c.b16 %v199, %v191
    %v240 = vpack.c.b16 %v200, %v192
    %v241 = vpack.c.b16 %v201, %v193
    %v242 = vpack.c.b16 %v202, %v194
    %v243 = vpack.c.b16 %v203, %v195
    %v244 = vpack.c.b16 %v204, %v196
    %v245 = vpack.c.b16 %v213, %v205
    %v246 = vpack.c.b16 %v214, %v206
    %v247 = vpack.c.b16 %v215, %v207
    %v248 = vpack.c.b16 %v216, %v208
    %v249 = vpack.c.b16 %v217, %v209
    %v250 = vpack.c.b16 %v218, %v210
    %v251 = vpack.c.b16 %v219, %v211
    %v252 = vpack.c.b16 %v220, %v212
    %vm285 = vcmask 523264
    %v287 = vsel %vm285, %v50, 0
    %289 = vmatprep.subr.bf16.mxu0 0
    %290 = vmatpush1.bf16.msra.mxu0 0
    %291 = vmatprep.subr.bf16.mxu0 0
    %292 = vmatpush1.bf16.msra.mxu0 0
    %293 = vmatprep.subr.bf16.mxu0 0
    %294 = vmatpush1.bf16.msra.mxu0 0
    %295 = vmatprep.subr.bf16.mxu0 0
    %296 = vmatpush1.bf16.msra.mxu0 0
    %297 = vmatprep.subr.bf16.mxu0 %v246
    %298 = vmatpush1.bf16.msra.mxu0 %v245
    %299 = vmatprep.subr.bf16.mxu0 %v238
    %300 = vmatpush1.bf16.msra.mxu0 %v237
    %301 = vmatprep.subr.bf16.mxu0 %v230
    %302 = vmatpush1.bf16.msra.mxu0 %v229
    %303 = vmatprep.subr.bf16.mxu0 %v222
    %304 = vmatpush1.bf16.msra.mxu0 %v221
    %305 = vmatprep.subr.bf16.mxu0 0
    %306 = vmatpush2.bf16.msra.mxu0 0
    %307 = vmatprep.subr.bf16.mxu0 0
    %308 = vmatpush2.bf16.msra.mxu0 0
    %309 = vmatprep.subr.bf16.mxu0 0
    %310 = vmatpush2.bf16.msra.mxu0 0
    %311 = vmatprep.subr.bf16.mxu0 0
    %312 = vmatpush2.bf16.msra.mxu0 0
    %313 = vmatprep.subr.bf16.mxu0 0
    %314 = vmatpush2.bf16.msra.mxu0 0
    %315 = vmatprep.subr.bf16.mxu0 0
    %316 = vmatpush2.bf16.msra.mxu0 0
    %317 = vmatprep.subr.bf16.mxu0 0
    %318 = vmatpush2.bf16.msra.mxu0 0
    %319 = vmatprep.subr.bf16.mxu0 0
    %320 = vmatpush2.bf16.msra.mxu0 0
    %321 = vmatprep.mubr.bf16.mxu0 0
    %322 = vmatmul.mubr.bf16.gmra.mxu0 %v287
    %v323 = vpop.f32.mrf.mxu0
    %v324 = vadd.f32 %v88, %v323
    %v325 = vpop.f32.mrf.mxu0
    %v326 = vadd.f32 %v92, %v325
    %v327 = vpop.f32.mrf.mxu0
    %v328 = vpop.f32.mrf.mxu0
    %329 = vdwg.mxu0
    %330 = vmatprep.subr.bf16.mxu0 0
    %331 = vmatpush1.bf16.msra.mxu0 0
    %332 = vmatprep.subr.bf16.mxu0 0
    %333 = vmatpush1.bf16.msra.mxu0 0
    %334 = vmatprep.subr.bf16.mxu0 0
    %335 = vmatpush1.bf16.msra.mxu0 0
    %336 = vmatprep.subr.bf16.mxu0 0
    %337 = vmatpush1.bf16.msra.mxu0 0
    %338 = vmatprep.subr.bf16.mxu0 %v248
    %339 = vmatpush1.bf16.msra.mxu0 %v247
    %340 = vmatprep.subr.bf16.mxu0 %v240
    %341 = vmatpush1.bf16.msra.mxu0 %v239
    %342 = vmatprep.subr.bf16.mxu0 %v232
    %343 = vmatpush1.bf16.msra.mxu0 %v231
    %344 = vmatprep.subr.bf16.mxu0 %v224
    %345 = vmatpush1.bf16.msra.mxu0 %v223
    %346 = vmatprep.subr.bf16.mxu0 0
    %347 = vmatpush2.bf16.msra.mxu0 0
    %348 = vmatprep.subr.bf16.mxu0 0
    %349 = vmatpush2.bf16.msra.mxu0 0
    %350 = vmatprep.subr.bf16.mxu0 0
    %351 = vmatpush2.bf16.msra.mxu0 0
    %352 = vmatprep.subr.bf16.mxu0 0
    %353 = vmatpush2.bf16.msra.mxu0 0
    %354 = vmatprep.subr.bf16.mxu0 0
    %355 = vmatpush2.bf16.msra.mxu0 0
    %356 = vmatprep.subr.bf16.mxu0 0
    %357 = vmatpush2.bf16.msra.mxu0 0
    %358 = vmatprep.subr.bf16.mxu0 0
    %359 = vmatpush2.bf16.msra.mxu0 0
    %360 = vmatprep.subr.bf16.mxu0 0
    %361 = vmatpush2.bf16.msra.mxu0 0
    %362 = vmatprep.mubr.bf16.mxu0 0
    %363 = vmatmul.mubr.bf16.gmra.mxu0 %v287
    %v364 = vpop.f32.mrf.mxu0
    %v365 = vadd.f32 %v96, %v364
    %v366 = vpop.f32.mrf.mxu0
    %v367 = vadd.f32 %v100, %v366
    %v368 = vpop.f32.mrf.mxu0
    %v369 = vpop.f32.mrf.mxu0
    %370 = vdwg.mxu0
    %371 = vmatprep.subr.bf16.mxu0 0
    %372 = vmatpush1.bf16.msra.mxu0 0
    %373 = vmatprep.subr.bf16.mxu0 0
    %374 = vmatpush1.bf16.msra.mxu0 0
    %375 = vmatprep.subr.bf16.mxu0 0
    %376 = vmatpush1.bf16.msra.mxu0 0
    %377 = vmatprep.subr.bf16.mxu0 0
    %378 = vmatpush1.bf16.msra.mxu0 0
    %379 = vmatprep.subr.bf16.mxu0 %v250
    %380 = vmatpush1.bf16.msra.mxu0 %v249
    %381 = vmatprep.subr.bf16.mxu0 %v242
    %382 = vmatpush1.bf16.msra.mxu0 %v241
    %383 = vmatprep.subr.bf16.mxu0 %v234
    %384 = vmatpush1.bf16.msra.mxu0 %v233
    %385 = vmatprep.subr.bf16.mxu0 %v226
    %386 = vmatpush1.bf16.msra.mxu0 %v225
    %387 = vmatprep.subr.bf16.mxu0 0
    %388 = vmatpush2.bf16.msra.mxu0 0
    %389 = vmatprep.subr.bf16.mxu0 0
    %390 = vmatpush2.bf16.msra.mxu0 0
    %391 = vmatprep.subr.bf16.mxu0 0
    %392 = vmatpush2.bf16.msra.mxu0 0
    %393 = vmatprep.subr.bf16.mxu0 0
    %394 = vmatpush2.bf16.msra.mxu0 0
    %395 = vmatprep.subr.bf16.mxu0 0
    %396 = vmatpush2.bf16.msra.mxu0 0
    %397 = vmatprep.subr.bf16.mxu0 0
    %398 = vmatpush2.bf16.msra.mxu0 0
    %399 = vmatprep.subr.bf16.mxu0 0
    %400 = vmatpush2.bf16.msra.mxu0 0
    %401 = vmatprep.subr.bf16.mxu0 0
    %402 = vmatpush2.bf16.msra.mxu0 0
    %403 = vmatprep.mubr.bf16.mxu0 0
    %404 = vmatmul.mubr.bf16.gmra.mxu0 %v287
    %v405 = vpop.f32.mrf.mxu0
    %v406 = vadd.f32 %v104, %v405
    %v407 = vpop.f32.mrf.mxu0
    %v408 = vadd.f32 %v108, %v407
    %v409 = vpop.f32.mrf.mxu0
    %v410 = vpop.f32.mrf.mxu0
    %411 = vdwg.mxu0
    %412 = vmatprep.subr.bf16.mxu0 0
    %413 = vmatpush1.bf16.msra.mxu0 0
    %414 = vmatprep.subr.bf16.mxu0 0
    %415 = vmatpush1.bf16.msra.mxu0 0
    %416 = vmatprep.subr.bf16.mxu0 0
    %417 = vmatpush1.bf16.msra.mxu0 0
    %418 = vmatprep.subr.bf16.mxu0 0
    %419 = vmatpush1.bf16.msra.mxu0 0
    %420 = vmatprep.subr.bf16.mxu0 %v252
    %421 = vmatpush1.bf16.msra.mxu0 %v251
    %422 = vmatprep.subr.bf16.mxu0 %v244
    %423 = vmatpush1.bf16.msra.mxu0 %v243
    %424 = vmatprep.subr.bf16.mxu0 %v236
    %425 = vmatpush1.bf16.msra.mxu0 %v235
    %426 = vmatprep.subr.bf16.mxu0 %v228
    %427 = vmatpush1.bf16.msra.mxu0 %v227
    %428 = vmatprep.subr.bf16.mxu0 0
    %429 = vmatpush2.bf16.msra.mxu0 0
    %430 = vmatprep.subr.bf16.mxu0 0
    %431 = vmatpush2.bf16.msra.mxu0 0
    %432 = vmatprep.subr.bf16.mxu0 0
    %433 = vmatpush2.bf16.msra.mxu0 0
    %434 = vmatprep.subr.bf16.mxu0 0
    %435 = vmatpush2.bf16.msra.mxu0 0
    %436 = vmatprep.subr.bf16.mxu0 0
    %437 = vmatpush2.bf16.msra.mxu0 0
    %438 = vmatprep.subr.bf16.mxu0 0
    %439 = vmatpush2.bf16.msra.mxu0 0
    %440 = vmatprep.subr.bf16.mxu0 0
    %441 = vmatpush2.bf16.msra.mxu0 0
    %442 = vmatprep.subr.bf16.mxu0 0
    %443 = vmatpush2.bf16.msra.mxu0 0
    %444 = vmatprep.mubr.bf16.mxu0 0
    %445 = vmatmul.mubr.bf16.gmra.mxu0 %v287
    %v446 = vpop.f32.mrf.mxu0
    %v447 = vadd.f32 %v112, %v446
    %v448 = vpop.f32.mrf.mxu0
    %v449 = vadd.f32 %v116, %v448
    %v450 = vpop.f32.mrf.mxu0
    %v451 = vpop.f32.mrf.mxu0
    %452 = vdwg.mxu0
    %v453 = vmax.f32 %v324, 0.0
    %v454 = vmax.f32 %v326, 0.0
    %v455 = vmax.f32 %v365, 0.0
    %v456 = vmax.f32 %v367, 0.0
    %v457 = vmax.f32 %v406, 0.0
    %v458 = vmax.f32 %v408, 0.0
    %v459 = vmax.f32 %v447, 0.0
    %v460 = vmax.f32 %v449, 0.0
    %v461 = vpack.c.bf16 %v453, %v453
    %v462 = vpack.c.bf16 %v454, %v454
    %v463 = vpack.c.bf16 %v455, %v455
    %v464 = vpack.c.bf16 %v456, %v456
    %v465 = vpack.c.bf16 %v457, %v457
    %v466 = vpack.c.bf16 %v458, %v458
    %v467 = vpack.c.bf16 %v459, %v459
    %v468 = vpack.c.bf16 %v460, %v460
    %v469 = vld [vmem:[#allocation4] sm:$0xf]
    %v470 = vld [vmem:[#allocation4 + $0x4] sm:$0xf]
    %v471 = vld [vmem:[#allocation4 + $0x8] sm:$0xf]
    %v472 = vld [vmem:[#allocation4 + $0xc] sm:$0xf]
    %v473 = vld [vmem:[#allocation4 + $0x10] sm:$0xf]
    %v474 = vld [vmem:[#allocation4 + $0x14] sm:$0xf]
    %v475 = vld [vmem:[#allocation4 + $0x18] sm:$0xf]
    %v476 = vld [vmem:[#allocation4 + $0x1c] sm:$0xf]
    %v477 = vld [vmem:[#allocation4 + $0x20] sm:$0xf]
    %v478 = vld [vmem:[#allocation4 + $0x24] sm:$0xf]
    %v479 = vld [vmem:[#allocation4 + $0x28] sm:$0xf]
    %v480 = vld [vmem:[#allocation4 + $0x2c] sm:$0xf]
    %v481 = vld [vmem:[#allocation4 + $0x30] sm:$0xf]
    %v482 = vld [vmem:[#allocation4 + $0x34] sm:$0xf]
    %v483 = vld [vmem:[#allocation4 + $0x38] sm:$0xf]
    %v484 = vld [vmem:[#allocation4 + $0x3c] sm:$0xf]
    %v485 = vld [vmem:[#allocation4 + $0x40] sm:$0xf]
    %v486 = vld [vmem:[#allocation4 + $0x44] sm:$0xf]
    %v487 = vld [vmem:[#allocation4 + $0x48] sm:$0xf]
    %v488 = vld [vmem:[#allocation4 + $0x4c] sm:$0xf]
    %v489 = vld [vmem:[#allocation4 + $0x50] sm:$0xf]
    %v490 = vld [vmem:[#allocation4 + $0x54] sm:$0xf]
    %v491 = vld [vmem:[#allocation4 + $0x58] sm:$0xf]
    %v492 = vld [vmem:[#allocation4 + $0x5c] sm:$0xf]
    %v493 = vld [vmem:[#allocation4 + $0x60] sm:$0xf]
    %v494 = vld [vmem:[#allocation4 + $0x64] sm:$0xf]
    %v495 = vld [vmem:[#allocation4 + $0x68] sm:$0xf]
    %v496 = vld [vmem:[#allocation4 + $0x6c] sm:$0xf]
    %v497 = vld [vmem:[#allocation4 + $0x70] sm:$0xf]
    %v498 = vld [vmem:[#allocation4 + $0x74] sm:$0xf]
    %v499 = vld [vmem:[#allocation4 + $0x78] sm:$0xf]
    %v500 = vld [vmem:[#allocation4 + $0x7c] sm:$0xf]
    %v501 = vld [vmem:[#allocation4 + $0x80] sm:$0xf]
    %v502 = vld [vmem:[#allocation4 + $0x84] sm:$0xf]
    %v503 = vld [vmem:[#allocation4 + $0x88] sm:$0xf]
    %v504 = vld [vmem:[#allocation4 + $0x8c] sm:$0xf]
    %v505 = vld [vmem:[#allocation4 + $0x90] sm:$0xf]
    %v506 = vld [vmem:[#allocation4 + $0x94] sm:$0xf]
    %v507 = vld [vmem:[#allocation4 + $0x98] sm:$0xf]
    %v508 = vld [vmem:[#allocation4 + $0x9c] sm:$0xf]
    %v509 = vld [vmem:[#allocation4 + $0xa0] sm:$0xf]
    %v510 = vld [vmem:[#allocation4 + $0xa4] sm:$0xf]
    %v511 = vld [vmem:[#allocation4 + $0xa8] sm:$0xf]
    %v512 = vld [vmem:[#allocation4 + $0xac] sm:$0xf]
    %v513 = vld [vmem:[#allocation4 + $0xb0] sm:$0xf]
    %v514 = vld [vmem:[#allocation4 + $0xb4] sm:$0xf]
    %v515 = vld [vmem:[#allocation4 + $0xb8] sm:$0xf]
    %v516 = vld [vmem:[#allocation4 + $0xbc] sm:$0xf]
    %v517 = vld [vmem:[#allocation4 + $0xc0] sm:$0xf]
    %v518 = vld [vmem:[#allocation4 + $0xc4] sm:$0xf]
    %v519 = vld [vmem:[#allocation4 + $0xc8] sm:$0xf]
    %v520 = vld [vmem:[#allocation4 + $0xcc] sm:$0xf]
    %v521 = vld [vmem:[#allocation4 + $0xd0] sm:$0xf]
    %v522 = vld [vmem:[#allocation4 + $0xd4] sm:$0xf]
    %v523 = vld [vmem:[#allocation4 + $0xd8] sm:$0xf]
    %v524 = vld [vmem:[#allocation4 + $0xdc] sm:$0xf]
    %v525 = vld [vmem:[#allocation4 + $0xe0] sm:$0xf]
    %v526 = vld [vmem:[#allocation4 + $0xe4] sm:$0xf]
    %v527 = vld [vmem:[#allocation4 + $0xe8] sm:$0xf]
    %v528 = vld [vmem:[#allocation4 + $0xec] sm:$0xf]
    %v529 = vld [vmem:[#allocation4 + $0xf0] sm:$0xf]
    %v530 = vld [vmem:[#allocation4 + $0xf4] sm:$0xf]
    %v531 = vld [vmem:[#allocation4 + $0xf8] sm:$0xf]
    %v532 = vld [vmem:[#allocation4 + $0xfc] sm:$0xf]
    %v533 = vld [vmem:[#allocation4 + $0x100] sm:$0xf]
    %v534 = vld [vmem:[#allocation4 + $0x104] sm:$0xf]
    %v535 = vld [vmem:[#allocation4 + $0x108] sm:$0xf]
    %v536 = vld [vmem:[#allocation4 + $0x10c] sm:$0xf]
    %v537 = vld [vmem:[#allocation4 + $0x110] sm:$0xf]
    %v538 = vld [vmem:[#allocation4 + $0x114] sm:$0xf]
    %v539 = vld [vmem:[#allocation4 + $0x118] sm:$0xf]
    %v540 = vld [vmem:[#allocation4 + $0x11c] sm:$0xf]
    %v541 = vld [vmem:[#allocation4 + $0x120] sm:$0xf]
    %v542 = vld [vmem:[#allocation4 + $0x124] sm:$0xf]
    %v543 = vld [vmem:[#allocation4 + $0x128] sm:$0xf]
    %v544 = vld [vmem:[#allocation4 + $0x12c] sm:$0xf]
    %v545 = vld [vmem:[#allocation4 + $0x130] sm:$0xf]
    %v546 = vld [vmem:[#allocation4 + $0x134] sm:$0xf]
    %v547 = vld [vmem:[#allocation4 + $0x138] sm:$0xf]
    %v548 = vld [vmem:[#allocation4 + $0x13c] sm:$0xf]
    %v549 = vld [vmem:[#allocation4 + $0x140] sm:$0xf]
    %v550 = vld [vmem:[#allocation4 + $0x144] sm:$0xf]
    %v551 = vld [vmem:[#allocation4 + $0x148] sm:$0xf]
    %v552 = vld [vmem:[#allocation4 + $0x14c] sm:$0xf]
    %v553 = vld [vmem:[#allocation4 + $0x150] sm:$0xf]
    %v554 = vld [vmem:[#allocation4 + $0x154] sm:$0xf]
    %v555 = vld [vmem:[#allocation4 + $0x158] sm:$0xf]
    %v556 = vld [vmem:[#allocation4 + $0x15c] sm:$0xf]
    %v557 = vld [vmem:[#allocation4 + $0x160] sm:$0xf]
    %v558 = vld [vmem:[#allocation4 + $0x164] sm:$0xf]
    %v559 = vld [vmem:[#allocation4 + $0x168] sm:$0xf]
    %v560 = vld [vmem:[#allocation4 + $0x16c] sm:$0xf]
    %v561 = vld [vmem:[#allocation4 + $0x170] sm:$0xf]
    %v562 = vld [vmem:[#allocation4 + $0x174] sm:$0xf]
    %v563 = vld [vmem:[#allocation4 + $0x178] sm:$0xf]
    %v564 = vld [vmem:[#allocation4 + $0x17c] sm:$0xf]
    %v565 = vld [vmem:[#allocation4 + $0x180] sm:$0xf]
    %v566 = vld [vmem:[#allocation4 + $0x184] sm:$0xf]
    %v567 = vld [vmem:[#allocation4 + $0x188] sm:$0xf]
    %v568 = vld [vmem:[#allocation4 + $0x18c] sm:$0xf]
    %v569 = vld [vmem:[#allocation4 + $0x190] sm:$0xf]
    %v570 = vld [vmem:[#allocation4 + $0x194] sm:$0xf]
    %v571 = vld [vmem:[#allocation4 + $0x198] sm:$0xf]
    %v572 = vld [vmem:[#allocation4 + $0x19c] sm:$0xf]
    %v573 = vld [vmem:[#allocation4 + $0x1a0] sm:$0xf]
    %v574 = vld [vmem:[#allocation4 + $0x1a4] sm:$0xf]
    %v575 = vld [vmem:[#allocation4 + $0x1a8] sm:$0xf]
    %v576 = vld [vmem:[#allocation4 + $0x1ac] sm:$0xf]
    %v577 = vld [vmem:[#allocation4 + $0x1b0] sm:$0xf]
    %v578 = vld [vmem:[#allocation4 + $0x1b4] sm:$0xf]
    %v579 = vld [vmem:[#allocation4 + $0x1b8] sm:$0xf]
    %v580 = vld [vmem:[#allocation4 + $0x1bc] sm:$0xf]
    %v581 = vld [vmem:[#allocation4 + $0x1c0] sm:$0xf]
    %v582 = vld [vmem:[#allocation4 + $0x1c4] sm:$0xf]
    %v583 = vld [vmem:[#allocation4 + $0x1c8] sm:$0xf]
    %v584 = vld [vmem:[#allocation4 + $0x1cc] sm:$0xf]
    %v585 = vld [vmem:[#allocation4 + $0x1d0] sm:$0xf]
    %v586 = vld [vmem:[#allocation4 + $0x1d4] sm:$0xf]
    %v587 = vld [vmem:[#allocation4 + $0x1d8] sm:$0xf]
    %v588 = vld [vmem:[#allocation4 + $0x1dc] sm:$0xf]
    %v589 = vld [vmem:[#allocation4 + $0x1e0] sm:$0xf]
    %v590 = vld [vmem:[#allocation4 + $0x1e4] sm:$0xf]
    %v591 = vld [vmem:[#allocation4 + $0x1e8] sm:$0xf]
    %v592 = vld [vmem:[#allocation4 + $0x1ec] sm:$0xf]
    %v593 = vld [vmem:[#allocation4 + $0x1f0] sm:$0xf]
    %v594 = vld [vmem:[#allocation4 + $0x1f4] sm:$0xf]
    %v595 = vld [vmem:[#allocation4 + $0x1f8] sm:$0xf]
    %v596 = vld [vmem:[#allocation4 + $0x1fc] sm:$0xf]
    %v597 = vld [vmem:[%s4] sm:$0x1]
    %v599 = vlaneseq
    %v600 = vshrl.u32 %v599, 7
    %v601 = vsub.s32 0, %v600
    %v602 = vrot.slane %v597, %v601
    %v732 = vunpack.c.l.b16 %v469
    %v733 = vunpack.c.l.b16 %v470
    %v734 = vunpack.c.l.b16 %v471
    %v735 = vunpack.c.l.b16 %v472
    %v736 = vunpack.c.l.b16 %v473
    %v737 = vunpack.c.l.b16 %v474
    %v738 = vunpack.c.l.b16 %v475
    %v739 = vunpack.c.l.b16 %v476
    %v740 = vunpack.c.l.b16 %v477
    %v741 = vunpack.c.l.b16 %v478
    %v742 = vunpack.c.l.b16 %v479
    %v743 = vunpack.c.l.b16 %v480
    %v744 = vunpack.c.l.b16 %v481
    %v745 = vunpack.c.l.b16 %v482
    %v746 = vunpack.c.l.b16 %v483
    %v747 = vunpack.c.l.b16 %v484
    %v748 = vunpack.c.l.b16 %v485
    %v749 = vunpack.c.l.b16 %v486
    %v750 = vunpack.c.l.b16 %v487
    %v751 = vunpack.c.l.b16 %v488
    %v752 = vunpack.c.l.b16 %v489
    %v753 = vunpack.c.l.b16 %v490
    %v754 = vunpack.c.l.b16 %v491
    %v755 = vunpack.c.l.b16 %v492
    %v756 = vunpack.c.l.b16 %v493
    %v757 = vunpack.c.l.b16 %v494
    %v758 = vunpack.c.l.b16 %v495
    %v759 = vunpack.c.l.b16 %v496
    %v760 = vunpack.c.l.b16 %v497
    %v761 = vunpack.c.l.b16 %v498
    %v762 = vunpack.c.l.b16 %v499
    %v763 = vunpack.c.l.b16 %v500
    %v764 = vunpack.c.l.b16 %v501
    %v765 = vunpack.c.l.b16 %v502
    %v766 = vunpack.c.l.b16 %v503
    %v767 = vunpack.c.l.b16 %v504
    %v768 = vunpack.c.l.b16 %v505
    %v769 = vunpack.c.l.b16 %v506
    %v770 = vunpack.c.l.b16 %v507
    %v771 = vunpack.c.l.b16 %v508
    %v772 = vunpack.c.l.b16 %v509
    %v773 = vunpack.c.l.b16 %v510
    %v774 = vunpack.c.l.b16 %v511
    %v775 = vunpack.c.l.b16 %v512
    %v776 = vunpack.c.l.b16 %v513
    %v777 = vunpack.c.l.b16 %v514
    %v778 = vunpack.c.l.b16 %v515
    %v779 = vunpack.c.l.b16 %v516
    %v780 = vunpack.c.l.b16 %v517
    %v781 = vunpack.c.l.b16 %v518
    %v782 = vunpack.c.l.b16 %v519
    %v783 = vunpack.c.l.b16 %v520
    %v784 = vunpack.c.l.b16 %v521
    %v785 = vunpack.c.l.b16 %v522
    %v786 = vunpack.c.l.b16 %v523
    %v787 = vunpack.c.l.b16 %v524
    %v788 = vunpack.c.l.b16 %v525
    %v789 = vunpack.c.l.b16 %v526
    %v790 = vunpack.c.l.b16 %v527
    %v791 = vunpack.c.l.b16 %v528
    %v792 = vunpack.c.l.b16 %v529
    %v793 = vunpack.c.l.b16 %v530
    %v794 = vunpack.c.l.b16 %v531
    %v795 = vunpack.c.l.b16 %v532
    %v796 = vunpack.c.l.b16 %v533
    %v797 = vunpack.c.l.b16 %v534
    %v798 = vunpack.c.l.b16 %v535
    %v799 = vunpack.c.l.b16 %v536
    %v800 = vunpack.c.l.b16 %v537
    %v801 = vunpack.c.l.b16 %v538
    %v802 = vunpack.c.l.b16 %v539
    %v803 = vunpack.c.l.b16 %v540
    %v804 = vunpack.c.l.b16 %v541
    %v805 = vunpack.c.l.b16 %v542
    %v806 = vunpack.c.l.b16 %v543
    %v807 = vunpack.c.l.b16 %v544
    %v808 = vunpack.c.l.b16 %v545
    %v809 = vunpack.c.l.b16 %v546
    %v810 = vunpack.c.l.b16 %v547
    %v811 = vunpack.c.l.b16 %v548
    %v812 = vunpack.c.l.b16 %v549
    %v813 = vunpack.c.l.b16 %v550
    %v814 = vunpack.c.l.b16 %v551
    %v815 = vunpack.c.l.b16 %v552
    %v816 = vunpack.c.l.b16 %v553
    %v817 = vunpack.c.l.b16 %v554
    %v818 = vunpack.c.l.b16 %v555
    %v819 = vunpack.c.l.b16 %v556
    %v820 = vunpack.c.l.b16 %v557
    %v821 = vunpack.c.l.b16 %v558
    %v822 = vunpack.c.l.b16 %v559
    %v823 = vunpack.c.l.b16 %v560
    %v824 = vunpack.c.l.b16 %v561
    %v825 = vunpack.c.l.b16 %v562
    %v826 = vunpack.c.l.b16 %v563
    %v827 = vunpack.c.l.b16 %v564
    %v828 = vunpack.c.l.b16 %v565
    %v829 = vunpack.c.l.b16 %v566
    %v830 = vunpack.c.l.b16 %v567
    %v831 = vunpack.c.l.b16 %v568
    %v832 = vunpack.c.l.b16 %v569
    %v833 = vunpack.c.l.b16 %v570
    %v834 = vunpack.c.l.b16 %v571
    %v835 = vunpack.c.l.b16 %v572
    %v836 = vunpack.c.l.b16 %v573
    %v837 = vunpack.c.l.b16 %v574
    %v838 = vunpack.c.l.b16 %v575
    %v839 = vunpack.c.l.b16 %v576
    %v840 = vunpack.c.l.b16 %v577
    %v841 = vunpack.c.l.b16 %v578
    %v842 = vunpack.c.l.b16 %v579
    %v843 = vunpack.c.l.b16 %v580
    %v844 = vunpack.c.l.b16 %v581
    %v845 = vunpack.c.l.b16 %v582
    %v846 = vunpack.c.l.b16 %v583
    %v847 = vunpack.c.l.b16 %v584
    %v848 = vunpack.c.l.b16 %v585
    %v849 = vunpack.c.l.b16 %v586
    %v850 = vunpack.c.l.b16 %v587
    %v851 = vunpack.c.l.b16 %v588
    %v852 = vunpack.c.l.b16 %v589
    %v853 = vunpack.c.l.b16 %v590
    %v854 = vunpack.c.l.b16 %v591
    %v855 = vunpack.c.l.b16 %v592
    %v856 = vunpack.c.l.b16 %v593
    %v857 = vunpack.c.l.b16 %v594
    %v858 = vunpack.c.l.b16 %v595
    %v859 = vunpack.c.l.b16 %v596
    %v860 = vpack.c.b16 %v733, %v732
    %v861 = vpack.c.b16 %v735, %v734
    %v862 = vpack.c.b16 %v737, %v736
    %v863 = vpack.c.b16 %v739, %v738
    %v864 = vpack.c.b16 %v741, %v740
    %v865 = vpack.c.b16 %v743, %v742
    %v866 = vpack.c.b16 %v745, %v744
    %v867 = vpack.c.b16 %v747, %v746
    %v868 = vpack.c.b16 %v749, %v748
    %v869 = vpack.c.b16 %v751, %v750
    %v870 = vpack.c.b16 %v753, %v752
    %v871 = vpack.c.b16 %v755, %v754
    %v872 = vpack.c.b16 %v757, %v756
    %v873 = vpack.c.b16 %v759, %v758
    %v874 = vpack.c.b16 %v761, %v760
    %v875 = vpack.c.b16 %v763, %v762
    %v876 = vpack.c.b16 %v765, %v764
    %v877 = vpack.c.b16 %v767, %v766
    %v878 = vpack.c.b16 %v769, %v768
    %v879 = vpack.c.b16 %v771, %v770
    %v880 = vpack.c.b16 %v773, %v772
    %v881 = vpack.c.b16 %v775, %v774
    %v882 = vpack.c.b16 %v777, %v776
    %v883 = vpack.c.b16 %v779, %v778
    %v884 = vpack.c.b16 %v781, %v780
    %v885 = vpack.c.b16 %v783, %v782
    %v886 = vpack.c.b16 %v785, %v784
    %v887 = vpack.c.b16 %v787, %v786
    %v888 = vpack.c.b16 %v789, %v788
    %v889 = vpack.c.b16 %v791, %v790
    %v890 = vpack.c.b16 %v793, %v792
    %v891 = vpack.c.b16 %v795, %v794
    %v892 = vpack.c.b16 %v797, %v796
    %v893 = vpack.c.b16 %v799, %v798
    %v894 = vpack.c.b16 %v801, %v800
    %v895 = vpack.c.b16 %v803, %v802
    %v896 = vpack.c.b16 %v805, %v804
    %v897 = vpack.c.b16 %v807, %v806
    %v898 = vpack.c.b16 %v809, %v808
    %v899 = vpack.c.b16 %v811, %v810
    %v900 = vpack.c.b16 %v813, %v812
    %v901 = vpack.c.b16 %v815, %v814
    %v902 = vpack.c.b16 %v817, %v816
    %v903 = vpack.c.b16 %v819, %v818
    %v904 = vpack.c.b16 %v821, %v820
    %v905 = vpack.c.b16 %v823, %v822
    %v906 = vpack.c.b16 %v825, %v824
    %v907 = vpack.c.b16 %v827, %v826
    %v908 = vpack.c.b16 %v829, %v828
    %v909 = vpack.c.b16 %v831, %v830
    %v910 = vpack.c.b16 %v833, %v832
    %v911 = vpack.c.b16 %v835, %v834
    %v912 = vpack.c.b16 %v837, %v836
    %v913 = vpack.c.b16 %v839, %v838
    %v914 = vpack.c.b16 %v841, %v840
    %v915 = vpack.c.b16 %v843, %v842
    %v916 = vpack.c.b16 %v845, %v844
    %v917 = vpack.c.b16 %v847, %v846
    %v918 = vpack.c.b16 %v849, %v848
    %v919 = vpack.c.b16 %v851, %v850
    %v920 = vpack.c.b16 %v853, %v852
    %v921 = vpack.c.b16 %v855, %v854
    %v922 = vpack.c.b16 %v857, %v856
    %v923 = vpack.c.b16 %v859, %v858
    %988 = vmatprep.subr.bf16.mxu0 0
    %989 = vmatpush1.bf16.msra.mxu0 %v867
    %990 = vmatprep.subr.bf16.mxu0 0
    %991 = vmatpush1.bf16.msra.mxu0 %v866
    %992 = vmatprep.subr.bf16.mxu0 0
    %993 = vmatpush1.bf16.msra.mxu0 %v865
    %994 = vmatprep.subr.bf16.mxu0 0
    %995 = vmatpush1.bf16.msra.mxu0 %v864
    %996 = vmatprep.subr.bf16.mxu0 0
    %997 = vmatpush1.bf16.msra.mxu0 %v863
    %998 = vmatprep.subr.bf16.mxu0 0
    %999 = vmatpush1.bf16.msra.mxu0 %v862
    %1000 = vmatprep.subr.bf16.mxu0 0
    %1001 = vmatpush1.bf16.msra.mxu0 %v861
    %1002 = vmatprep.subr.bf16.mxu0 0
    %1003 = vmatpush1.bf16.msra.mxu0 %v860
    %1004 = vmatprep.subr.bf16.mxu0 0
    %1005 = vmatpush2.bf16.msra.mxu0 %v875
    %1006 = vmatprep.subr.bf16.mxu0 0
    %1007 = vmatpush2.bf16.msra.mxu0 %v874
    %1008 = vmatprep.subr.bf16.mxu0 0
    %1009 = vmatpush2.bf16.msra.mxu0 %v873
    %1010 = vmatprep.subr.bf16.mxu0 0
    %1011 = vmatpush2.bf16.msra.mxu0 %v872
    %1012 = vmatprep.subr.bf16.mxu0 0
    %1013 = vmatpush2.bf16.msra.mxu0 %v871
    %1014 = vmatprep.subr.bf16.mxu0 0
    %1015 = vmatpush2.bf16.msra.mxu0 %v870
    %1016 = vmatprep.subr.bf16.mxu0 0
    %1017 = vmatpush2.bf16.msra.mxu0 %v869
    %1018 = vmatprep.subr.bf16.mxu0 0
    %1019 = vmatpush2.bf16.msra.mxu0 %v868
    %1020 = vmatprep.mubr.bf16.mxu0 %v462
    %1021 = vmatmul.mubr.bf16.gmra.mxu0 %v461
    %v1022 = vpop.f32.mrf.mxu0
    %v1023 = vadd.f32 %v602, %v1022
    %v1024 = vpop.f32.mrf.mxu0
    %v1025 = vpop.f32.mrf.mxu0
    %v1026 = vpop.f32.mrf.mxu0
    %1027 = vdwg.mxu0
    %1028 = vmatprep.subr.bf16.mxu0 0
    %1029 = vmatpush1.bf16.msra.mxu0 %v883
    %1030 = vmatprep.subr.bf16.mxu0 0
    %1031 = vmatpush1.bf16.msra.mxu0 %v882
    %1032 = vmatprep.subr.bf16.mxu0 0
    %1033 = vmatpush1.bf16.msra.mxu0 %v881
    %1034 = vmatprep.subr.bf16.mxu0 0
    %1035 = vmatpush1.bf16.msra.mxu0 %v880
    %1036 = vmatprep.subr.bf16.mxu0 0
    %1037 = vmatpush1.bf16.msra.mxu0 %v879
    %1038 = vmatprep.subr.bf16.mxu0 0
    %1039 = vmatpush1.bf16.msra.mxu0 %v878
    %1040 = vmatprep.subr.bf16.mxu0 0
    %1041 = vmatpush1.bf16.msra.mxu0 %v877
    %1042 = vmatprep.subr.bf16.mxu0 0
    %1043 = vmatpush1.bf16.msra.mxu0 %v876
    %1044 = vmatprep.subr.bf16.mxu0 0
    %1045 = vmatpush2.bf16.msra.mxu0 %v891
    %1046 = vmatprep.subr.bf16.mxu0 0
    %1047 = vmatpush2.bf16.msra.mxu0 %v890
    %1048 = vmatprep.subr.bf16.mxu0 0
    %1049 = vmatpush2.bf16.msra.mxu0 %v889
    %1050 = vmatprep.subr.bf16.mxu0 0
    %1051 = vmatpush2.bf16.msra.mxu0 %v888
    %1052 = vmatprep.subr.bf16.mxu0 0
    %1053 = vmatpush2.bf16.msra.mxu0 %v887
    %1054 = vmatprep.subr.bf16.mxu0 0
    %1055 = vmatpush2.bf16.msra.mxu0 %v886
    %1056 = vmatprep.subr.bf16.mxu0 0
    %1057 = vmatpush2.bf16.msra.mxu0 %v885
    %1058 = vmatprep.subr.bf16.mxu0 0
    %1059 = vmatpush2.bf16.msra.mxu0 %v884
    %1060 = vmatprep.mubr.bf16.mxu0 %v464
    %1061 = vmatmul.mubr.bf16.gmra.mxu0 %v463
    %v1062 = vpop.f32.mrf.mxu0
    %v1063 = vadd.f32 %v1023, %v1062
    %v1064 = vpop.f32.mrf.mxu0
    %v1065 = vpop.f32.mrf.mxu0
    %v1066 = vpop.f32.mrf.mxu0
    %1067 = vdwg.mxu0
    %1068 = vmatprep.subr.bf16.mxu0 0
    %1069 = vmatpush1.bf16.msra.mxu0 %v899
    %1070 = vmatprep.subr.bf16.mxu0 0
    %1071 = vmatpush1.bf16.msra.mxu0 %v898
    %1072 = vmatprep.subr.bf16.mxu0 0
    %1073 = vmatpush1.bf16.msra.mxu0 %v897
    %1074 = vmatprep.subr.bf16.mxu0 0
    %1075 = vmatpush1.bf16.msra.mxu0 %v896
    %1076 = vmatprep.subr.bf16.mxu0 0
    %1077 = vmatpush1.bf16.msra.mxu0 %v895
    %1078 = vmatprep.subr.bf16.mxu0 0
    %1079 = vmatpush1.bf16.msra.mxu0 %v894
    %1080 = vmatprep.subr.bf16.mxu0 0
    %1081 = vmatpush1.bf16.msra.mxu0 %v893
    %1082 = vmatprep.subr.bf16.mxu0 0
    %1083 = vmatpush1.bf16.msra.mxu0 %v892
    %1084 = vmatprep.subr.bf16.mxu0 0
    %1085 = vmatpush2.bf16.msra.mxu0 %v907
    %1086 = vmatprep.subr.bf16.mxu0 0
    %1087 = vmatpush2.bf16.msra.mxu0 %v906
    %1088 = vmatprep.subr.bf16.mxu0 0
    %1089 = vmatpush2.bf16.msra.mxu0 %v905
    %1090 = vmatprep.subr.bf16.mxu0 0
    %1091 = vmatpush2.bf16.msra.mxu0 %v904
    %1092 = vmatprep.subr.bf16.mxu0 0
    %1093 = vmatpush2.bf16.msra.mxu0 %v903
    %1094 = vmatprep.subr.bf16.mxu0 0
    %1095 = vmatpush2.bf16.msra.mxu0 %v902
    %1096 = vmatprep.subr.bf16.mxu0 0
    %1097 = vmatpush2.bf16.msra.mxu0 %v901
    %1098 = vmatprep.subr.bf16.mxu0 0
    %1099 = vmatpush2.bf16.msra.mxu0 %v900
    %1100 = vmatprep.mubr.bf16.mxu0 %v466
    %1101 = vmatmul.mubr.bf16.gmra.mxu0 %v465
    %v1102 = vpop.f32.mrf.mxu0
    %v1103 = vadd.f32 %v1063, %v1102
    %v1104 = vpop.f32.mrf.mxu0
    %v1105 = vpop.f32.mrf.mxu0
    %v1106 = vpop.f32.mrf.mxu0
    %1107 = vdwg.mxu0
    %1108 = vmatprep.subr.bf16.mxu0 0
    %1109 = vmatpush1.bf16.msra.mxu0 %v915
    %1110 = vmatprep.subr.bf16.mxu0 0
    %1111 = vmatpush1.bf16.msra.mxu0 %v914
    %1112 = vmatprep.subr.bf16.mxu0 0
    %1113 = vmatpush1.bf16.msra.mxu0 %v913
    %1114 = vmatprep.subr.bf16.mxu0 0
    %1115 = vmatpush1.bf16.msra.mxu0 %v912
    %1116 = vmatprep.subr.bf16.mxu0 0
    %1117 = vmatpush1.bf16.msra.mxu0 %v911
    %1118 = vmatprep.subr.bf16.mxu0 0
    %1119 = vmatpush1.bf16.msra.mxu0 %v910
    %1120 = vmatprep.subr.bf16.mxu0 0
    %1121 = vmatpush1.bf16.msra.mxu0 %v909
    %1122 = vmatprep.subr.bf16.mxu0 0
    %1123 = vmatpush1.bf16.msra.mxu0 %v908
    %1124 = vmatprep.subr.bf16.mxu0 0
    %1125 = vmatpush2.bf16.msra.mxu0 %v923
    %1126 = vmatprep.subr.bf16.mxu0 0
    %1127 = vmatpush2.bf16.msra.mxu0 %v922
    %1128 = vmatprep.subr.bf16.mxu0 0
    %1129 = vmatpush2.bf16.msra.mxu0 %v921
    %1130 = vmatprep.subr.bf16.mxu0 0
    %1131 = vmatpush2.bf16.msra.mxu0 %v920
    %1132 = vmatprep.subr.bf16.mxu0 0
    %1133 = vmatpush2.bf16.msra.mxu0 %v919
    %1134 = vmatprep.subr.bf16.mxu0 0
    %1135 = vmatpush2.bf16.msra.mxu0 %v918
    %1136 = vmatprep.subr.bf16.mxu0 0
    %1137 = vmatpush2.bf16.msra.mxu0 %v917
    %1138 = vmatprep.subr.bf16.mxu0 0
    %1139 = vmatpush2.bf16.msra.mxu0 %v916
    %1140 = vmatprep.mubr.bf16.mxu0 %v468
    %1141 = vmatmul.mubr.bf16.gmra.mxu0 %v467
    %v1142 = vpop.f32.mrf.mxu0
    %v1143 = vadd.f32 %v1103, %v1142
    %v1144 = vpop.f32.mrf.mxu0
    %v1145 = vpop.f32.mrf.mxu0
    %v1146 = vpop.f32.mrf.mxu0
    %1147 = vdwg.mxu0
    %1148 = vst [vmem:[%s5] sm:$0xff] %v1143
    // Predicated region
    $region30: #{dqn_forward.1} parent=1 // pred_check
      _
    $region31: #{dqn_forward.1} parent=1 // pred_check_branch
      %1150 = sbr.rel (0) target = $region33
    $region32: #{dqn_forward.1} parent=1 // pred_region
      _
    $region33: #{dqn_forward.1} parent=1 // pred_fallthru
      _
    // Predicated region
    $region34: #{dqn_forward.1} parent=1 // pred_check
      _
    $region35: #{dqn_forward.1} parent=1 // pred_check_branch
      %1152 = sbr.rel (0) target = $region37
    $region36: #{dqn_forward.1} parent=1 // pred_region
      _
    $region37: #{dqn_forward.1} parent=1 // pred_fallthru
      _
    %1153 = vsyncpa [#allocation3], 1
    %1154 = vsyncpa [#allocation5], 1

</llo_original>
